<compile_context>
chip_gen: v5e
topology: v5e:2x2
jax: 0.10.0
libtpu: 0.0.40
codegen_flags: <defaults>
</compile_context>

<pallas_src>
import math
import jax
import jax.numpy as jnp
from jax.experimental import pallas as pl
from jax.experimental.pallas import tpu as pltpu


# ---------------------------------------------------------------------------
# Kernel 1: dense layer  y = x @ w + b, tiled over rows.
# Used for the hoisted input->gates GEMM and for the output Linear, both of
# which are fully parallel over timesteps and must not sit on the recurrence.
# ---------------------------------------------------------------------------
def _dense_kernel(x_ref, w_ref, b_ref, o_ref):
    o_ref[...] = (
        jnp.dot(x_ref[...], w_ref[...], preferred_element_type=jnp.float32)
        + b_ref[...]
    ).astype(o_ref.dtype)


def dense(x, w, b, *, tm=512):
    """x: (M, K), w: (K, N), b: (1, N) -> (M, N) float32."""
    M, K = x.shape
    _, N = w.shape
    tm = min(tm, M)
    M_pad = pl.cdiv(M, tm) * tm
    if M_pad != M:
        x = jnp.pad(x, ((0, M_pad - M), (0, 0)))

    out = pl.pallas_call(
        _dense_kernel,
        out_shape=jax.ShapeDtypeStruct((M_pad, N), jnp.float32),
        grid_spec=pltpu.PrefetchScalarGridSpec(
            num_scalar_prefetch=0,
            grid=(M_pad // tm,),
            in_specs=[
                pl.BlockSpec((tm, K), lambda i: (i, 0)),
                pl.BlockSpec((K, N), lambda i: (0, 0)),
                pl.BlockSpec((1, N), lambda i: (0, 0)),
            ],
            out_specs=pl.BlockSpec((tm, N), lambda i: (i, 0)),
        ),
        compiler_params=pltpu.CompilerParams(
            dimension_semantics=("parallel",)),
        cost_estimate=pl.CostEstimate(
            flops=2 * M_pad * K * N,
            transcendentals=0,
            bytes_accessed=4 * (M_pad * K + K * N + N + M_pad * N),
        ),
    )(x, w, b)
    return out[:M]


# ---------------------------------------------------------------------------
# Kernel 2: GRU recurrence over a chunk of timesteps.
#   gi_ref    : (T_CHUNK, B_GROUP, 3H)  precomputed input-gate pre-activations
#   w_h_ref   : (H, 3H)                 fused [w_hr | w_hz | w_hn]
#   b_hn_ref  : (1, H)                  hidden bias of the n gate (r-gated)
#   h_out_ref : (T_CHUNK, B_GROUP, H)   hidden state at every timestep
#   h_scratch : (B_GROUP, H)            carried hidden state (VMEM)
# Grid = (batch_groups [parallel], time_chunks [arbitrary]).
# ---------------------------------------------------------------------------
def _gru_recurrence_kernel(gi_ref, w_h_ref, b_hn_ref, h_out_ref, h_scratch):
    c = pl.program_id(1)

    @pl.when(c == 0)
    def _():
        # PyTorch GRU default initial hidden state h_0 = 0.
        h_scratch[...] = jnp.zeros_like(h_scratch)

    w_h = w_h_ref[...]          # (H, 3H), loop-invariant
    H = w_h.shape[0]
    T = gi_ref.shape[0]
    Bg = h_scratch.shape[0]
    # Hoist the bias broadcast out of the unrolled loop (no CSE of
    # broadcast_in_dim inside the loop body otherwise).
    b_hn = jnp.broadcast_to(b_hn_ref[...], (Bg, H))

    def step(i, h):
        gi = gi_ref[i]                                              # (Bg, 3H)
        gh = jnp.dot(h, w_h, preferred_element_type=jnp.float32)    # (Bg, 3H)
        # PyTorch gate order (r, z, n); b_ir+b_hr, b_iz+b_hz, b_in already
        # folded into gi.  b_hn must stay inside the r-gated term.
        r = jax.nn.sigmoid(gi[:, 0 * H:1 * H] + gh[:, 0 * H:1 * H])
        z = jax.nn.sigmoid(gi[:, 1 * H:2 * H] + gh[:, 1 * H:2 * H])
        n = jnp.tanh(gi[:, 2 * H:3 * H] + r * (gh[:, 2 * H:3 * H] + b_hn))
        h_new = (1.0 - z) * n + z * h
        h_out_ref[i] = h_new.astype(h_out_ref.dtype)
        return h_new

    h_final = jax.lax.fori_loop(0, T, step, h_scratch[...], unroll=True)
    h_scratch[...] = h_final


def encoder_forward(inp, params, *, t_chunk=None):
    """inp: (S, B, I) float32.  Returns (S, B, O) float32."""
    S, B, I = inp.shape
    H = params["w_hr"].shape[0]
    O = params["w_lin"].shape[1]

    # ---- fused weights / biases (outside the kernel, once) ----
    w_i = jnp.concatenate(
        [params["w_ir"], params["w_iz"], params["w_in"]], axis=1)   # (I, 3H)
    w_h = jnp.concatenate(
        [params["w_hr"], params["w_hz"], params["w_hn"]], axis=1)   # (H, 3H)
    b_i = jnp.concatenate(
        [params["b_ir"] + params["b_hr"],
         params["b_iz"] + params["b_hz"],
         params["b_in"]], axis=1)                                   # (1, 3H)
    b_hn = params["b_hn"]                                           # (1, H)

    # ---- 1. hoisted input->gates GEMM over all timesteps (parallel) ----
    gi = dense(inp.reshape(S * B, I), w_i, b_i).reshape(S, B, 3 * H)

    # ---- 2. pad batch to a sublane multiple and time to a chunk multiple ----
    B_GROUP = 8
    B_pad = ((B + B_GROUP - 1) // B_GROUP) * B_GROUP
    if t_chunk is None:
        t_chunk = min(S, 32)
    S_pad = ((S + t_chunk - 1) // t_chunk) * t_chunk
    gi = jnp.pad(gi, ((0, S_pad - S), (0, B_pad - B), (0, 0)))

    n_b = B_pad // B_GROUP
    n_c = S_pad // t_chunk

    hs = pl.pallas_call(
        _gru_recurrence_kernel,
        out_shape=jax.ShapeDtypeStruct((S_pad, B_pad, H), jnp.float32),
        grid_spec=pltpu.PrefetchScalarGridSpec(
            num_scalar_prefetch=0,
            grid=(n_b, n_c),
            in_specs=[
                pl.BlockSpec((t_chunk, B_GROUP, 3 * H), lambda b, c: (c, b, 0)),
                pl.BlockSpec((H, 3 * H), lambda b, c: (0, 0)),
                pl.BlockSpec((1, H), lambda b, c: (0, 0)),
            ],
            out_specs=pl.BlockSpec((t_chunk, B_GROUP, H),
                                   lambda b, c: (c, b, 0)),
            scratch_shapes=[pltpu.VMEM((B_GROUP, H), jnp.float32)],
        ),
        compiler_params=pltpu.CompilerParams(
            # batch groups are independent (parallel, megacore-shardable);
            # the time recurrence must stay sequential (arbitrary).
            dimension_semantics=("parallel", "arbitrary")),
        cost_estimate=pl.CostEstimate(
            flops=2 * S_pad * B_pad * H * 3 * H,
            transcendentals=3 * S_pad * B_pad * H,
            bytes_accessed=4 * (S_pad * B_pad * 4 * H + H * 3 * H + H),
        ),
    )(gi, w_h, b_hn)

    hs = hs[:S, :B, :]   # drop batch/time padding

    # ---- 3. output Linear over all timesteps (parallel) ----
    out = dense(hs.reshape(S * B, H), params["w_lin"], params["b_lin"])
    return out.reshape(S, B, O)


def encoder_reference(inp, params):
    """Pure-JAX reference mirroring torch.nn.GRU + nn.Linear (unfused)."""
    H = params["w_ir"].shape[1]
    B = inp.shape[1]

    def step(h, x):
        gi_r = x @ params["w_ir"] + params["b_ir"]
        gi_z = x @ params["w_iz"] + params["b_iz"]
        gi_n = x @ params["w_in"] + params["b_in"]
        gh_r = h @ params["w_hr"] + params["b_hr"]
        gh_z = h @ params["w_hz"] + params["b_hz"]
        gh_n = h @ params["w_hn"] + params["b_hn"]
        r = jax.nn.sigmoid(gi_r + gh_r)
        z = jax.nn.sigmoid(gi_z + gh_z)
        n = jnp.tanh(gi_n + r * gh_n)
        h_new = (1.0 - z) * n + z * h
        return h_new, h_new

    h0 = jnp.zeros((B, H), jnp.float32)
    _, hs = jax.lax.scan(step, h0, inp)
    return hs @ params["w_lin"] + params["b_lin"]


def init_params(key, input_size, hidden_size, output_size):
    """Deterministic init matching nn.GRU/nn.Linear parameter shapes.
    (Weights stored transposed — (in, out) — for direct x @ W use.)"""
    ks = jax.random.split(key, 14)
    k_gru = 1.0 / math.sqrt(hidden_size)
    k_lin = 1.0 / math.sqrt(hidden_size)
    u = lambda k, shape, bound: jax.random.uniform(
        k, shape, jnp.float32, minval=-bound, maxval=bound)
    return {
        "w_ir": u(ks[0], (input_size, hidden_size), k_gru),
        "w_iz": u(ks[1], (input_size, hidden_size), k_gru),
        "w_in": u(ks[2], (input_size, hidden_size), k_gru),
        "w_hr": u(ks[3], (hidden_size, hidden_size), k_gru),
        "w_hz": u(ks[4], (hidden_size, hidden_size), k_gru),
        "w_hn": u(ks[5], (hidden_size, hidden_size), k_gru),
        "b_ir": u(ks[6], (1, hidden_size), k_gru),
        "b_iz": u(ks[7], (1, hidden_size), k_gru),
        "b_in": u(ks[8], (1, hidden_size), k_gru),
        "b_hr": u(ks[9], (1, hidden_size), k_gru),
        "b_hz": u(ks[10], (1, hidden_size), k_gru),
        "b_hn": u(ks[11], (1, hidden_size), k_gru),
        "w_lin": u(ks[12], (hidden_size, output_size), k_lin),
        "b_lin": u(ks[13], (1, output_size), k_lin),
    }


if __name__ == "__main__":
    SEQ, BATCH = 8, 2
    INPUT_SIZE, HIDDEN_SIZE, OUTPUT_SIZE = 16, 32, 8

    key = jax.random.PRNGKey(0)
    k_inp, k_par = jax.random.split(key)
    inp = jax.random.normal(k_inp, (SEQ, BATCH, INPUT_SIZE), jnp.float32)
    params = init_params(k_par, INPUT_SIZE, HIDDEN_SIZE, OUTPUT_SIZE)

    out = jax.block_until_ready(encoder_forward(inp, params))
    ref = jax.block_until_ready(encoder_reference(inp, params))

    assert out.shape == (SEQ, BATCH, OUTPUT_SIZE)
    assert jnp.allclose(out, ref, rtol=1e-4, atol=1e-4), (
        f"max abs err {jnp.max(jnp.abs(out - ref))}")

    print("KERNEL_OK")
</pallas_src>

<mosaic_0001>
module attributes {stable_mosaic.version = 11 : i64} {
  func.func @_dense_kernel(%arg0: i32, %arg1: memref<16x16xf32, #tpu.memory_space<vmem>>, %arg2: memref<16x96xf32, #tpu.memory_space<vmem>>, %arg3: memref<1x96xf32, #tpu.memory_space<vmem>>, %arg4: memref<16x96xf32, #tpu.memory_space<vmem>>) attributes {dimension_semantics = [#tpu.dimension_semantics<parallel>], iteration_bounds = array<i64: 1>, scalar_prefetch = 0 : i64, scratch_operands = 0 : i64, tpu.core_type = #tpu.core_type<tc>, window_params = [{transform_indices = @transform_0, window_bounds = array<i64: 16, 16>}, {pipeline_mode = #tpu.pipeline_mode<synchronous>, transform_indices = @transform_1, window_bounds = array<i64: 16, 96>}, {pipeline_mode = #tpu.pipeline_mode<synchronous>, transform_indices = @transform_2, window_bounds = array<i64: 1, 96>}, {transform_indices = @transform_3, window_bounds = array<i64: 16, 96>}]} {
    %c0 = arith.constant 0 : index
    %c0_0 = arith.constant 0 : index
    %0 = vector.load %arg1[%c0, %c0_0] : memref<16x16xf32, #tpu.memory_space<vmem>>, vector<16x16xf32>
    %c0_1 = arith.constant 0 : index
    %c0_2 = arith.constant 0 : index
    %1 = vector.load %arg2[%c0_1, %c0_2] : memref<16x96xf32, #tpu.memory_space<vmem>>, vector<16x96xf32>
    %cst = arith.constant dense<0.000000e+00> : vector<16x96xf32>
    %2 = tpu.matmul %0, %1, %cst {dimension_numbers = #tpu.dot_dimension_numbers<[1], [0], [0], [1], [0, 0, 1, 1], [], []>} : vector<16x16xf32>, vector<16x96xf32>, vector<16x96xf32> -> vector<16x96xf32>
    %c0_3 = arith.constant 0 : index
    %c0_4 = arith.constant 0 : index
    %3 = vector.load %arg3[%c0_3, %c0_4] : memref<1x96xf32, #tpu.memory_space<vmem>>, vector<1x96xf32>
    %4 = vector.broadcast %3 : vector<1x96xf32> to vector<16x96xf32>
    %5 = arith.addf %2, %4 : vector<16x96xf32>
    %c0_5 = arith.constant 0 : index
    %c0_6 = arith.constant 0 : index
    %6 = vector.load %arg4[%c0_5, %c0_6] : memref<16x96xf32, #tpu.memory_space<vmem>>, vector<16x96xf32>
    tpu.vector_store %arg4[%c0_5, %c0_6], %5 {strides = array<i32>} : memref<16x96xf32, #tpu.memory_space<vmem>>, vector<16x96xf32>,
    return
  }
  func.func @transform_0(%arg0: i32) -> (i32, i32) {
    %c0_i32 = arith.constant 0 : i32
    %c0_i32_0 = arith.constant 0 : i32
    return %arg0, %c0_i32 : i32, i32
  }
  func.func @transform_1(%arg0: i32) -> (i32, i32) {
    %c0_i32 = arith.constant 0 : i32
    %c0_i32_0 = arith.constant 0 : i32
    %c0_i32_1 = arith.constant 0 : i32
    return %c0_i32, %c0_i32_0 : i32, i32
  }
  func.func @transform_2(%arg0: i32) -> (i32, i32) {
    %c0_i32 = arith.constant 0 : i32
    %c0_i32_0 = arith.constant 0 : i32
    %c0_i32_1 = arith.constant 0 : i32
    return %c0_i32, %c0_i32_0 : i32, i32
  }
  func.func @transform_3(%arg0: i32) -> (i32, i32) {
    %c0_i32 = arith.constant 0 : i32
    %c0_i32_0 = arith.constant 0 : i32
    return %arg0, %c0_i32 : i32, i32
  }
}

</mosaic_0001>

<llo_original>
// kernel: tpu_custom_call.1
$region0: #{tpu_custom_call.1}
  #allocation0 [shape = 'u32[]', space=smem, size = 0x4, offset = 0x4, fixed_abs, tag = 'smem constant byte address 0x4 - core index']
  #allocation1 [shape = 'u32[72,128]{1,0:T(1,128)}', space=vmem, size = 0x9000, scoped, tag = 'internal scratch']
  %s0 = inlined_call_operand.hbm [shape: f32[16,16], index: 0, kind: input, shape index: {}]
  %s1 = inlined_call_operand.hbm [shape: f32[16,96], index: 1, kind: input, shape index: {}]
  %s2 = inlined_call_operand.vmem [shape: f32[1,96], index: 2, kind: input, shape index: {}]
  %s3 = inlined_call_operand.hbm [shape: f32[16,96], index: 3, kind: output, shape index: {}]
  %s4 = sld [smem:[#allocation0]]
  $region30: #{tpu_custom_call.1} parent=0
    _
  %s6 = ssub.s32 1, %s4
  %s7 = scalar_select 0, %s6, %s4
  $region1: #{tpu_custom_call.1} parent=0
    #allocation2 [shape = 'u8[8192]{0}', space=vmem, size = 0x2000, scoped, tag = 'input window, operand 0, single buffered']
    #allocation3 [shape = 's32[1]{0}', space=sflag, size = 0x4, scoped, tag = 'scoped memory for tpu_custom_call.1']
    #allocation4 [shape = 's32[1]{0}', space=sflag, size = 0x4, scoped, tag = 'scoped memory for tpu_custom_call.1']
    #allocation5 [shape = 'u8[8192]{0}', space=vmem, size = 0x2000, scoped, tag = 'input window, operand 1, single buffered']
    #allocation6 [shape = 's32[1]{0}', space=sflag, size = 0x4, scoped, tag = 'scoped memory for tpu_custom_call.1']
    #allocation7 [shape = 'u8[8192]{0}', space=vmem, size = 0x2000, scoped, tag = 'output window, operand 0, single buffered']
    %8 = vsyncpa [#allocation3], 0
    %9 = vsyncpa [#allocation6], 0
    %10 = vsyncpa [#allocation4], 0
    // Predicated region
    $region2: #{tpu_custom_call.1} parent=1 // pred_check
      _
    $region3: #{tpu_custom_call.1} parent=1 // pred_check_branch
      %12 = sbr.rel (0) target = $region5
    $region4: #{tpu_custom_call.1} parent=1 // pred_region
      %14 = vsyncadd [#allocation3], 0
      %s15 = sshll.u32 %s0, 4
      %s16 = int_to_ptr.hbm [resolvable:$true] %s15
      %s17 = sshll.u32 [#allocation2], 4
      %s18 = int_to_ptr.vmem [resolvable:$true] %s17
      %23 = dma.hbm_to_vmem [thread:$0]  %s16, 256, %s18, [#allocation3], 128, 128, 8
    $region5: #{tpu_custom_call.1} parent=1 // pred_fallthru
      _
    // Predicated region
    $region6: #{tpu_custom_call.1} parent=1 // pred_check
      _
    $region7: #{tpu_custom_call.1} parent=1 // pred_check_branch
      %25 = sbr.rel (0) target = $region9
    $region8: #{tpu_custom_call.1} parent=1 // pred_region
      %27 = vsyncadd [#allocation6], 0
      %s28 = sshll.u32 %s1, 4
      %s29 = int_to_ptr.hbm [resolvable:$true] %s28
      %s30 = sshll.u32 [#allocation5], 4
      %s31 = int_to_ptr.vmem [resolvable:$true] %s30
      %36 = dma.hbm_to_vmem [thread:$0]  %s29, 256, %s31, [#allocation6], 128, 128, 8
    $region9: #{tpu_custom_call.1} parent=1 // pred_fallthru
      _
    // Predicated region
    $region10: #{tpu_custom_call.1} parent=1 // pred_check
      _
    $region11: #{tpu_custom_call.1} parent=1 // pred_check_branch
      %38 = sbr.rel (0) target = $region13
    $region12: #{tpu_custom_call.1} parent=1 // pred_region
      _
    $region13: #{tpu_custom_call.1} parent=1 // pred_fallthru
      _
    // Predicated region
    $region14: #{tpu_custom_call.1} parent=1 // pred_check
      _
    $region15: #{tpu_custom_call.1} parent=1 // pred_check_branch
      %40 = sbr.rel (0) target = $region17
    $region16: #{tpu_custom_call.1} parent=1 // pred_region
      %42 = dma.done [#allocation3], 256
    $region17: #{tpu_custom_call.1} parent=1 // pred_fallthru
      _
    // Predicated region
    $region18: #{tpu_custom_call.1} parent=1 // pred_check
      _
    $region19: #{tpu_custom_call.1} parent=1 // pred_check_branch
      %44 = sbr.rel (0) target = $region21
    $region20: #{tpu_custom_call.1} parent=1 // pred_region
      %46 = dma.done [#allocation6], 256
    $region21: #{tpu_custom_call.1} parent=1 // pred_fallthru
      _
    %v47 = vld [vmem:[#allocation2] sm:$0xff]
    %v48 = vld [vmem:[#allocation2 + $0x8] sm:$0xff]
    %v49 = vld [vmem:[#allocation5] sm:$0xff]
    %v50 = vld [vmem:[#allocation5 + $0x8] sm:$0xff]
    %v51 = vld [vmem:[%s2] sm:$0x1]
    %v53 = vperm.slane %v51, 0
    %vm55 = vcmask 130048
    %v57 = vsel %vm55, %v47, 0
    %v60 = vsel %vm55, %v48, 0
    %62 = vmatpush.msra.mxu0 0.0
    %63 = vmatpush.msra.mxu0 0.0
    %64 = vmatpush.msra.mxu0 0.0
    %65 = vmatpush.msra.mxu0 0.0
    %66 = vmatpush.msra.mxu0 0.0
    %67 = vmatpush.msra.mxu0 0.0
    %68 = vmatpush.msra.mxu0 0.0
    %69 = vmatpush.msra.mxu0 0.0
    %70 = vmatpush.msra.mxu0 0.0
    %71 = vmatpush.msra.mxu0 0.0
    %72 = vmatpush.msra.mxu0 0.0
    %73 = vmatpush.msra.mxu0 0.0
    %74 = vmatpush.msra.mxu0 0.0
    %75 = vmatpush.msra.mxu0 0.0
    %76 = vmatpush.msra.mxu0 %v50
    %77 = vmatpush.msra.mxu0 %v49
    %78 = vmatmul.f32.gmra.mxu0 %v57
    %v79 = vpop.f32.mrf.mxu0
    %v80 = vadd.f32 %v53, %v79
    %81 = vmatmul.f32.gmra.mxu0 %v60
    %v82 = vpop.f32.mrf.mxu0
    %v83 = vadd.f32 %v53, %v82
    %84 = vdwg.mxu0
    %vm85 = vcmask 785408
    %86 = vst.msk [vmem:[#allocation7] sm:$0xff] %vm85, %v80
    %87 = vst.msk [vmem:[#allocation7 + $0x8] sm:$0xff] %vm85, %v83
    // Predicated region
    $region22: #{tpu_custom_call.1} parent=1 // pred_check
      _
    $region23: #{tpu_custom_call.1} parent=1 // pred_check_branch
      %89 = sbr.rel (0) target = $region25
    $region24: #{tpu_custom_call.1} parent=1 // pred_region
      %91 = vsyncadd [#allocation4], 0
      %s92 = sshll.u32 [#allocation7], 4
      %s93 = int_to_ptr.vmem [resolvable:$true] %s92
      %s94 = sshll.u32 %s3, 4
      %s95 = int_to_ptr.hbm [resolvable:$true] %s94
      %100 = dma.vmem_to_hbm [thread:$0]  %s93, 256, %s95, [#allocation4], 128, 128, 8
    $region25: #{tpu_custom_call.1} parent=1 // pred_fallthru
      _
    // Predicated region
    $region26: #{tpu_custom_call.1} parent=1 // pred_check
      _
    $region27: #{tpu_custom_call.1} parent=1 // pred_check_branch
      %102 = sbr.rel (0) target = $region29
    $region28: #{tpu_custom_call.1} parent=1 // pred_region
      %104 = dma.done [#allocation4], 256
    $region29: #{tpu_custom_call.1} parent=1 // pred_fallthru
      _
    %105 = vsyncpa [#allocation3], 1
    %106 = vsyncpa [#allocation6], 1
    %107 = vsyncpa [#allocation4], 1

</llo_original>
